<compile_context>
chip_gen: v5e
topology: v5e:2x2
jax: 0.10.0
libtpu: 0.0.40
codegen_flags: <defaults>
</compile_context>

<pallas_src>
import functools

import jax
import jax.numpy as jnp
from jax import lax
from jax.experimental import pallas as pl
from jax.experimental.pallas import tpu as pltpu


# ---------------------------------------------------------------------------
# Kernels
# ---------------------------------------------------------------------------

def _label_smoothing_dense_kernel(pred_ref, lab_ref, out_ref, *, classes,
                                  smoothing, batch, block_rows,
                                  labels_sum_to_one):
    confidence = 1.0 - smoothing
    smooth_val = smoothing / (classes - 1)
    delta = confidence - smooth_val

    x = pred_ref[...].astype(jnp.float32)      # (tb, C)
    lab = lab_ref[...].astype(jnp.float32)     # (tb, C)

    # Centered logits -> numerically stable, no O(|x|) cancellation.
    m = jnp.max(x, axis=-1, keepdims=True)
    xc = x - m
    lse_c = jnp.log(jnp.sum(jnp.exp(xc), axis=-1, keepdims=True))

    sum_xc = jnp.sum(xc, axis=-1, keepdims=True)
    sum_labxc = jnp.sum(lab * xc, axis=-1, keepdims=True)
    if labels_sum_to_one:
        sum_smooth = smooth_val * classes + delta               # constant
    else:
        sum_lab = jnp.sum(lab, axis=-1, keepdims=True)
        sum_smooth = smooth_val * classes + delta * sum_lab

    per_row = sum_smooth * lse_c - (smooth_val * sum_xc + delta * sum_labxc)

    # Mask rows past the real batch: the last block may be partially
    # out of bounds and its padded input rows hold unspecified values.
    row = (pl.program_id(0) * block_rows
           + lax.broadcasted_iota(jnp.int32, per_row.shape, 0))
    per_row = jnp.where(row < batch, per_row, 0.0)

    out_ref[...] = per_row.astype(out_ref.dtype)               # (tb, 1)


def _label_smoothing_onehot_kernel(pred_ref, tgt_ref, out_ref, *, classes,
                                   smoothing, batch, block_rows):
    confidence = 1.0 - smoothing
    smooth_val = smoothing / (classes - 1)
    delta = confidence - smooth_val

    x = pred_ref[...].astype(jnp.float32)      # (tb, C)
    tgt = tgt_ref[...]                         # (tb, 1) int32

    m = jnp.max(x, axis=-1, keepdims=True)
    xc = x - m
    lse_c = jnp.log(jnp.sum(jnp.exp(xc), axis=-1, keepdims=True))

    sum_xc = jnp.sum(xc, axis=-1, keepdims=True)
    col = lax.broadcasted_iota(jnp.int32, x.shape, 1)
    xc_tgt = jnp.sum(jnp.where(col == tgt, xc, 0.0), axis=-1, keepdims=True)

    sum_smooth = smooth_val * classes + delta                   # one-hot: sum(lab)=1
    per_row = sum_smooth * lse_c - (smooth_val * sum_xc + delta * xc_tgt)

    row = (pl.program_id(0) * block_rows
           + lax.broadcasted_iota(jnp.int32, per_row.shape, 0))
    per_row = jnp.where(row < batch, per_row, 0.0)

    out_ref[...] = per_row.astype(out_ref.dtype)


# ---------------------------------------------------------------------------
# Block-size / VMEM policy (generation aware)
# ---------------------------------------------------------------------------

def _vmem_limit_bytes():
    cap = 128 * 1024 * 1024                      # v5e / v6e physical
    try:
        cap = int(pltpu.get_tpu_info().vmem_capacity_bytes)
    except Exception:                            # query unavailable -> assume v7x-ish
        cap = 64 * 1024 * 1024
    # Stay well inside physical VMEM: 48 MiB on v5e/v6e (128 MiB), ~38 MiB on
    # v7x (64 MiB).
    return min(48 * 1024 * 1024, (cap * 3) // 5)


def _sublane_pack(*dtypes):
    pack = 8
    for dt in dtypes:
        bits = jnp.dtype(dt).itemsize * 8
        pack = max(pack, 256 // max(bits, 1))    # 8 f32, 16 bf16, 32 int8
    return pack


def _choose_block_rows(batch, per_row_bytes, pack, tile_budget):
    br = max(pack, tile_budget // max(per_row_bytes, 1))
    # Keep >= ~8 grid blocks so the "parallel" axis can feed both v7x
    # TensorCores and per-step overhead stays amortized.
    split_cap = -(-batch // 8)
    split_cap = max(pack, ((split_cap + pack - 1) // pack) * pack)
    br = min(br, split_cap)
    br -= br % pack
    return max(pack, br)


def _input_spec(block_shape, index_map, deep):
    if deep and hasattr(pl, "Buffered"):
        try:
            return pl.BlockSpec(block_shape, index_map,
                                pipeline_mode=pl.Buffered(3))
        except TypeError:
            pass
    return pl.BlockSpec(block_shape, index_map)


# ---------------------------------------------------------------------------
# Wrappers
# ---------------------------------------------------------------------------

def label_smoothing_loss(predictions, labels, *, classes, smoothing=0.0,
                         labels_sum_to_one=False, block_rows=None):
    """Dense-label path. predictions, labels: [B, C]. Returns scalar f32.

    `labels` may be bf16 (halves label HBM traffic; exact for 0/1 one-hot).
    Set `labels_sum_to_one=True` when labels are a distribution to skip the
    sum(labels) lane reduction.
    """
    B, C = predictions.shape
    assert C == classes and labels.shape == (B, C)

    vmem_limit = _vmem_limit_bytes()
    pack = _sublane_pack(predictions.dtype, labels.dtype)
    p_it = jnp.dtype(predictions.dtype).itemsize
    l_it = jnp.dtype(labels.dtype).itemsize
    if block_rows is None:
        # double-buffered inputs + in-kernel f32 working copies, per row.
        per_row_bytes = C * (2 * p_it + 4) + C * (2 * l_it + 4)
        block_rows = _choose_block_rows(B, per_row_bytes, pack, vmem_limit // 2)
    assert block_rows % 8 == 0

    num_blocks = -(-B // block_rows)
    out_rows = num_blocks * block_rows
    deep = (block_rows * C * p_it < (2 << 20)) and num_blocks >= 4

    # TODO(synk): for C << 128 the lane axis is mostly padding; a production
    # path would fold rows into lanes or use plain XLA for tiny class counts.

    kernel = functools.partial(
        _label_smoothing_dense_kernel, classes=classes, smoothing=smoothing,
        batch=B, block_rows=block_rows, labels_sum_to_one=labels_sum_to_one)

    per_row = pl.pallas_call(
        kernel,
        out_shape=jax.ShapeDtypeStruct((out_rows, 1), jnp.float32),
        grid_spec=pltpu.PrefetchScalarGridSpec(
            num_scalar_prefetch=0,
            grid=(num_blocks,),
            in_specs=[
                _input_spec((block_rows, C), lambda i: (i, 0), deep),
                _input_spec((block_rows, C), lambda i: (i, 0), deep),
            ],
            out_specs=pl.BlockSpec((block_rows, 1), lambda i: (i, 0)),
        ),
        compiler_params=pltpu.CompilerParams(
            dimension_semantics=("parallel",),
            vmem_limit_bytes=vmem_limit,
        ),
    )(predictions, labels)

    # Tail rows were zeroed in-kernel -> plain sum, single divide.
    return jnp.sum(per_row[:, 0]) / B


def label_smoothing_loss_onehot(predictions, target_ids, *, classes,
                                smoothing=0.0, block_rows=None):
    """One-hot fast path: integer class targets (B,) instead of dense labels."""
    B, C = predictions.shape
    assert C == classes and target_ids.shape == (B,)
    tgt = target_ids.astype(jnp.int32).reshape(B, 1)

    vmem_limit = _vmem_limit_bytes()
    pack = _sublane_pack(predictions.dtype)
    p_it = jnp.dtype(predictions.dtype).itemsize
    if block_rows is None:
        per_row_bytes = C * (2 * p_it + 4) + 16
        block_rows = _choose_block_rows(B, per_row_bytes, pack, vmem_limit // 2)
    assert block_rows % 8 == 0

    num_blocks = -(-B // block_rows)
    out_rows = num_blocks * block_rows
    deep = (block_rows * C * p_it < (2 << 20)) and num_blocks >= 4

    kernel = functools.partial(
        _label_smoothing_onehot_kernel, classes=classes, smoothing=smoothing,
        batch=B, block_rows=block_rows)

    per_row = pl.pallas_call(
        kernel,
        out_shape=jax.ShapeDtypeStruct((out_rows, 1), jnp.float32),
        grid_spec=pltpu.PrefetchScalarGridSpec(
            num_scalar_prefetch=0,
            grid=(num_blocks,),
            in_specs=[
                _input_spec((block_rows, C), lambda i: (i, 0), deep),
                pl.BlockSpec((block_rows, 1), lambda i: (i, 0)),
            ],
            out_specs=pl.BlockSpec((block_rows, 1), lambda i: (i, 0)),
        ),
        compiler_params=pltpu.CompilerParams(
            dimension_semantics=("parallel",),
            vmem_limit_bytes=vmem_limit,
        ),
    )(predictions, tgt)

    return jnp.sum(per_row[:, 0]) / B


# ---------------------------------------------------------------------------
# Reference + self-test
# ---------------------------------------------------------------------------

def _reference(predictions, labels, *, classes, smoothing):
    confidence = 1.0 - smoothing
    logp = jax.nn.log_softmax(predictions.astype(jnp.float32), axis=-1)
    smooth = labels * confidence + (1.0 - labels) * (smoothing / (classes - 1))
    return jnp.mean(jnp.sum(-smooth * logp, axis=-1))


if __name__ == "__main__":
    key = jax.random.PRNGKey(0)
    k1, k2, k3, k4, k5 = jax.random.split(key, 5)

    # Case 1: one-hot fast path (integer targets; no dense label tensor).
    classes1, smoothing1, B1 = 128, 0.1, 16
    pred1 = jax.random.normal(k1, (B1, classes1), dtype=jnp.float32)
    tgt1 = jax.random.randint(k2, (B1,), 0, classes1)
    loss1 = jax.block_until_ready(
        label_smoothing_loss_onehot(pred1, tgt1, classes=classes1,
                                    smoothing=smoothing1))
    ref1 = _reference(pred1, jax.nn.one_hot(tgt1, classes1, dtype=jnp.float32),
                      classes=classes1, smoothing=smoothing1)
    assert jnp.allclose(loss1, ref1, rtol=1e-5, atol=1e-5), (loss1, ref1)

    # Case 2: dense soft labels, ragged batch (exercises in-kernel tail
    # masking; no wrapper-side padding copies), labels known to sum to one.
    classes2, smoothing2, B2 = 32, 0.2, 20
    pred2 = jax.random.normal(k3, (B2, classes2), dtype=jnp.float32)
    lab2 = jax.nn.softmax(jax.random.normal(k4, (B2, classes2)), axis=-1)
    loss2 = jax.block_until_ready(
        label_smoothing_loss(pred2, lab2, classes=classes2,
                             smoothing=smoothing2, labels_sum_to_one=True))
    ref2 = _reference(pred2, lab2, classes=classes2, smoothing=smoothing2)
    assert jnp.allclose(loss2, ref2, rtol=1e-5, atol=1e-5), (loss2, ref2)

    # Case 3: general dense path with bf16 labels (exact for 0/1), ragged B,
    # no sum-to-one assumption.
    classes3, smoothing3, B3 = 32, 0.1, 24
    pred3 = jax.random.normal(k5, (B3, classes3), dtype=jnp.float32)
    tgt3 = jax.random.randint(k2, (B3,), 0, classes3)
    lab3 = jax.nn.one_hot(tgt3, classes3, dtype=jnp.bfloat16)
    loss3 = jax.block_until_ready(
        label_smoothing_loss(pred3, lab3, classes=classes3,
                             smoothing=smoothing3))
    ref3 = _reference(pred3, lab3.astype(jnp.float32), classes=classes3,
                      smoothing=smoothing3)
    assert jnp.allclose(loss3, ref3, rtol=1e-5, atol=1e-5), (loss3, ref3)

    print("KERNEL_OK")
</pallas_src>

<mosaic_0001>
module attributes {stable_mosaic.version = 11 : i64} {
  func.func @_label_smoothing_onehot_kernel(%arg0: i32, %arg1: memref<8x128xf32, #tpu.memory_space<vmem>>, %arg2: memref<8x1xi32, #tpu.memory_space<vmem>>, %arg3: memref<8x1xf32, #tpu.memory_space<vmem>>) attributes {dimension_semantics = [#tpu.dimension_semantics<parallel>], iteration_bounds = array<i64: 2>, scalar_prefetch = 0 : i64, scratch_operands = 0 : i64, tpu.core_type = #tpu.core_type<tc>, window_params = [{transform_indices = @transform_0, window_bounds = array<i64: 8, 128>}, {transform_indices = @transform_1, window_bounds = array<i64: 8, 1>}, {transform_indices = @transform_2, window_bounds = array<i64: 8, 1>}]} {
    %c0 = arith.constant 0 : index
    %c0_0 = arith.constant 0 : index
    %0 = vector.load %arg1[%c0, %c0_0] : memref<8x128xf32, #tpu.memory_space<vmem>>, vector<8x128xf32>
    %c0_1 = arith.constant 0 : index
    %c0_2 = arith.constant 0 : index
    %1 = vector.load %arg2[%c0_1, %c0_2] : memref<8x1xi32, #tpu.memory_space<vmem>>, vector<8x1xi32>
    %cst = arith.constant dense<0xFF800000> : vector<8xf32>
    %2 = vector.multi_reduction <maximumf>, %0, %cst [1] : vector<8x128xf32> to vector<8xf32>
    %3 = vector.shape_cast %2 : vector<8xf32> to vector<8x1xf32>
    %4 = vector.broadcast %3 : vector<8x1xf32> to vector<8x128xf32>
    %5 = arith.subf %0, %4 : vector<8x128xf32>
    %6 = math.exp %5 : vector<8x128xf32>
    %cst_3 = arith.constant dense<0.000000e+00> : vector<8xf32>
    %7 = vector.multi_reduction <add>, %6, %cst_3 [1] : vector<8x128xf32> to vector<8xf32>
    %8 = vector.shape_cast %7 : vector<8xf32> to vector<8x1xf32>
    %9 = math.log %8 : vector<8x1xf32>
    %cst_4 = arith.constant dense<0.000000e+00> : vector<8xf32>
    %10 = vector.multi_reduction <add>, %5, %cst_4 [1] : vector<8x128xf32> to vector<8xf32>
    %11 = vector.shape_cast %10 : vector<8xf32> to vector<8x1xf32>
    %12 = tpu.iota {dimensions = array<i32: 1>} : vector<8x128xi32>
    %13 = vector.broadcast %1 : vector<8x1xi32> to vector<8x128xi32>
    %14 = arith.cmpi eq, %12, %13 : vector<8x128xi32>
    %cst_5 = arith.constant 0.000000e+00 : f32
    %15 = vector.broadcast %cst_5 : f32 to vector<8x128xf32>
    %16 = arith.select %14, %5, %15 : vector<8x128xi1>, vector<8x128xf32>
    %cst_6 = arith.constant dense<0.000000e+00> : vector<8xf32>
    %17 = vector.multi_reduction <add>, %16, %cst_6 [1] : vector<8x128xf32> to vector<8xf32>
    %18 = vector.shape_cast %17 : vector<8xf32> to vector<8x1xf32>
    %cst_7 = arith.constant 1.000000e+00 : f32
    %19 = vector.broadcast %cst_7 : f32 to vector<8x1xf32>
    %20 = arith.mulf %19, %9 : vector<8x1xf32>
    %cst_8 = arith.constant 7.87401571E-4 : f32
    %21 = vector.broadcast %cst_8 : f32 to vector<8x1xf32>
    %22 = arith.mulf %21, %11 : vector<8x1xf32>
    %cst_9 = arith.constant 0.899212599 : f32
    %23 = vector.broadcast %cst_9 : f32 to vector<8x1xf32>
    %24 = arith.mulf %23, %18 : vector<8x1xf32>
    %25 = arith.addf %22, %24 : vector<8x1xf32>
    %26 = arith.subf %20, %25 : vector<8x1xf32>
    %c8_i32 = arith.constant 8 : i32
    %27 = arith.muli %arg0, %c8_i32 : i32
    %28 = tpu.iota {dimensions = array<i32: 0>} : vector<8x1xi32>
    %29 = vector.broadcast %27 : i32 to vector<8x1xi32>
    %30 = arith.addi %29, %28 : vector<8x1xi32>
    %c16_i32 = arith.constant 16 : i32
    %31 = vector.broadcast %c16_i32 : i32 to vector<8x1xi32>
    %32 = arith.cmpi slt, %30, %31 : vector<8x1xi32>
    %cst_10 = arith.constant 0.000000e+00 : f32
    %33 = vector.broadcast %cst_10 : f32 to vector<8x1xf32>
    %34 = arith.select %32, %26, %33 : vector<8x1xi1>, vector<8x1xf32>
    %c0_11 = arith.constant 0 : index
    %c0_12 = arith.constant 0 : index
    %35 = vector.load %arg3[%c0_11, %c0_12] : memref<8x1xf32, #tpu.memory_space<vmem>>, vector<8x1xf32>
    tpu.vector_store %arg3[%c0_11, %c0_12], %34 {strides = array<i32>} : memref<8x1xf32, #tpu.memory_space<vmem>>, vector<8x1xf32>,
    return
  }
  func.func @transform_0(%arg0: i32) -> (i32, i32) {
    %c0_i32 = arith.constant 0 : i32
    %c0_i32_0 = arith.constant 0 : i32
    return %arg0, %c0_i32 : i32, i32
  }
  func.func @transform_1(%arg0: i32) -> (i32, i32) {
    %c0_i32 = arith.constant 0 : i32
    %c0_i32_0 = arith.constant 0 : i32
    return %arg0, %c0_i32 : i32, i32
  }
  func.func @transform_2(%arg0: i32) -> (i32, i32) {
    %c0_i32 = arith.constant 0 : i32
    %c0_i32_0 = arith.constant 0 : i32
    return %arg0, %c0_i32 : i32, i32
  }
}

</mosaic_0001>

<llo_original>
// kernel: tpu_custom_call.1
$region0: #{tpu_custom_call.1}
  #allocation0 [shape = 'u32[]', space=smem, size = 0x4, offset = 0x4, fixed_abs, tag = 'smem constant byte address 0x4 - core index']
  #allocation1 [shape = 'u32[72,128]{1,0:T(1,128)}', space=vmem, size = 0x9000, scoped, tag = 'internal scratch']
  %s0 = inlined_call_operand.vmem [shape: f32[16,128], index: 0, kind: input, shape index: {}]
  %s1 = inlined_call_operand.vmem [shape: s32[16,1], index: 1, kind: input, shape index: {}]
  %s2 = inlined_call_operand.vmem [shape: f32[16,1], index: 2, kind: output, shape index: {}]
  %s3 = sld [smem:[#allocation0]]
  $region41: #{tpu_custom_call.1} parent=0
    _
  %s5 = ssub.s32 1, %s3
  %s6 = scalar_select 0, %s5, %s3
  loop: start=0, step=1, limit=4
  $region2: #{tpu_custom_call.1} parent=0 // loop_pre_header
    _
  $region3: #{tpu_custom_call.1} parent=0 // loop_header
    %s8 = sphi 0, %s12
    %p9 = scmp.ge.s32.totalorder %s8, 4
    %s18 = sphi 0, %s20
    %s21 = sphi 0, %s18
    %s22 = sphi 0, %s21
    %s38 = sphi 0, %s22
    %s44 = sphi 0, %s46
    %s47 = sphi 0, %s44
    %s48 = sphi 0, %s47
    %s64 = sphi 0, %s48
    %s70 = sphi 0, %s72
    %s73 = sphi 0, %s70
    %s74 = sphi 0, %s73
    %s90 = sphi 0, %s74
  $region4: #{tpu_custom_call.1} parent=0 // loop_header_branch
    %11 = sbr.rel (%p9) target = $region8
  $region5: #{tpu_custom_call.1} parent=0 // loop_body
    %s13 = ssub.s32 %s8, 1
    %s14 = ssub.s32 %s8, 2
    %s15 = sadd.s32 %s8, 1
    %s16 = ssub.s32 %s8, %s15
    %p17 = scmp.eq.s32.totalorder %s16, 0
    %s19 = sadd.s32 %s18, 1
    %s20 = scalar_select %p17, %s18, %s19
    %p23 = pneg %p17
    %p24 = scmp.eq.s32.totalorder %s8, 1
    %p25 = por %p23, %p24
    %p26 = scmp.ne.s32.totalorder %s18, %s21
    %p27 = scmp.eq.s32.totalorder %s8, 0
    %p28 = por %p26, %p27
    %p29 = scmp.ne.s32.totalorder %s18, %s21
    %p30 = scmp.eq.s32.totalorder %s13, 1
    %p31 = por %p29, %p30
    %p32 = scmp.ne.s32.totalorder %s21, %s22
    %p33 = scmp.eq.s32.totalorder %s13, 0
    %p34 = por %p32, %p33
    %p35 = scmp.ne.s32.totalorder %s21, %s22
    %p36 = scmp.eq.s32.totalorder %s14, 1
    %p37 = por %p35, %p36
    %p39 = scmp.ne.s32.totalorder %s22, %s38
    %p40 = scmp.eq.s32.totalorder %s14, 0
    %p41 = por %p39, %p40
    %s42 = ssub.s32 %s8, %s15
    %p43 = scmp.eq.s32.totalorder %s42, 0
    %s45 = sadd.s32 %s44, 1
    %s46 = scalar_select %p43, %s44, %s45
    %p49 = pneg %p43
    %p50 = scmp.eq.s32.totalorder %s8, 1
    %p51 = por %p49, %p50
    %p52 = scmp.ne.s32.totalorder %s44, %s47
    %p53 = scmp.eq.s32.totalorder %s8, 0
    %p54 = por %p52, %p53
    %p55 = scmp.ne.s32.totalorder %s44, %s47
    %p56 = scmp.eq.s32.totalorder %s13, 1
    %p57 = por %p55, %p56
    %p58 = scmp.ne.s32.totalorder %s47, %s48
    %p59 = scmp.eq.s32.totalorder %s13, 0
    %p60 = por %p58, %p59
    %p61 = scmp.ne.s32.totalorder %s47, %s48
    %p62 = scmp.eq.s32.totalorder %s14, 1
    %p63 = por %p61, %p62
    %p65 = scmp.ne.s32.totalorder %s48, %s64
    %p66 = scmp.eq.s32.totalorder %s14, 0
    %p67 = por %p65, %p66
    %s68 = ssub.s32 %s8, %s15
    %p69 = scmp.eq.s32.totalorder %s68, 0
    %s71 = sadd.s32 %s70, 1
    %s72 = scalar_select %p69, %s70, %s71
    %p75 = pneg %p69
    %p76 = scmp.eq.s32.totalorder %s8, 1
    %p77 = por %p75, %p76
    %p78 = scmp.ne.s32.totalorder %s70, %s73
    %p79 = scmp.eq.s32.totalorder %s8, 0
    %p80 = por %p78, %p79
    %p81 = scmp.ne.s32.totalorder %s70, %s73
    %p82 = scmp.eq.s32.totalorder %s13, 1
    %p83 = por %p81, %p82
    %p84 = scmp.ne.s32.totalorder %s73, %s74
    %p85 = scmp.eq.s32.totalorder %s13, 0
    %p86 = por %p84, %p85
    %p87 = scmp.ne.s32.totalorder %s73, %s74
    %p88 = scmp.eq.s32.totalorder %s14, 1
    %p89 = por %p87, %p88
    %p91 = scmp.ne.s32.totalorder %s74, %s90
    %p92 = scmp.eq.s32.totalorder %s14, 0
    %p93 = por %p91, %p92
    %p94 = scmp.le.s32.totalorder 1, %s8
    %p95 = scmp.lt.s32.totalorder %s8, 3
    %p96 = pnand %p94, %p95
    %p97 = pneg %p96
    // Predicated region
    $region9: #{tpu_custom_call.1} parent=5 // pred_check
      _
    $region10: #{tpu_custom_call.1} parent=5 // pred_check_branch
      %99 = sbr.rel (%p96) target = $region12
    $region11: #{tpu_custom_call.1} parent=5 // pred_region
      %s100 = ssub.s32 %s8, 1
    $region12: #{tpu_custom_call.1} parent=5 // pred_fallthru
      _
    %p101 = scmp.lt.s32.totalorder %s8, 2
    // Predicated region
    $region13: #{tpu_custom_call.1} parent=5 // pred_check
      %p102 = pneg %p101
    $region14: #{tpu_custom_call.1} parent=5 // pred_check_branch
      %104 = sbr.rel (%p102) target = $region16
    $region15: #{tpu_custom_call.1} parent=5 // pred_region
      // Predicated region
      $region17: #{tpu_custom_call.1} parent=15 // pred_check
        %p105 = pneg %p28
      $region18: #{tpu_custom_call.1} parent=15 // pred_check_branch
        %107 = sbr.rel (%p105) target = $region20
      $region19: #{tpu_custom_call.1} parent=15 // pred_region
        %p108 = scmp.lt.s32.totalorder %s8, 1
        %s109 = scalar_select %p108, %s8, 1
        %s110 = smul.addr %s109, 8
        %s111 = scalar_lea.vmem %s0, %s110
      $region20: #{tpu_custom_call.1} parent=15 // pred_fallthru
        _
      // Predicated region
      $region21: #{tpu_custom_call.1} parent=15 // pred_check
        %p112 = pneg %p54
      $region22: #{tpu_custom_call.1} parent=15 // pred_check_branch
        %114 = sbr.rel (%p112) target = $region24
      $region23: #{tpu_custom_call.1} parent=15 // pred_region
        %p115 = scmp.lt.s32.totalorder %s8, 1
        %s116 = scalar_select %p115, %s8, 1
        %s117 = smul.addr %s116, 8
        %s118 = scalar_lea.vmem %s1, %s117
      $region24: #{tpu_custom_call.1} parent=15 // pred_fallthru
        _
    $region16: #{tpu_custom_call.1} parent=5 // pred_fallthru
      _
    %p119 = scmp.le.s32.totalorder 1, %s8
    %p120 = scmp.lt.s32.totalorder %s8, 3
    %p121 = pnand %p119, %p120
    %p122 = pneg %p121
    // Predicated region
    $region25: #{tpu_custom_call.1} parent=5 // pred_check
      _
    $region26: #{tpu_custom_call.1} parent=5 // pred_check_branch
      %124 = sbr.rel (%p121) target = $region28
    $region27: #{tpu_custom_call.1} parent=5 // pred_region
      %s125 = ssub.s32 %s8, 1
      %p126 = scmp.lt.s32.totalorder %s13, 1
      %s127 = scalar_select %p126, %s13, 1
      %s128 = smul.addr %s127, 8
      %s129 = scalar_lea.vmem %s0, %s128
      %p130 = pneg %p34
      %p131 = pneg %p31
      %p132 = scmp.lt.s32.totalorder %s13, 1
      %s133 = scalar_select %p132, %s13, 1
      %s134 = smul.addr %s133, 8
      %s135 = scalar_lea.vmem %s1, %s134
      %p136 = pneg %p60
      %p137 = pneg %p57
      %p138 = pneg %p86
      %p139 = pneg %p83
      %p140 = scmp.lt.s32.totalorder %s13, 1
      %s141 = scalar_select %p140, %s13, 1
      %s142 = smul.addr %s141, 8
      %s143 = scalar_lea.vmem %s2, %s142
      %p144 = scmp.lt.s32.totalorder %s13, 1
      %s145 = scalar_select %p144, %s13, 1
      %s146 = smul.addr %s145, 8
      %s147 = scalar_lea.vmem %s0, %s146
      %p148 = scmp.lt.s32.totalorder %s13, 1
      %s149 = scalar_select %p148, %s13, 1
      %s150 = smul.addr %s149, 8
      %s151 = scalar_lea.vmem %s1, %s150
      %p152 = scmp.lt.s32.totalorder %s13, 1
      %s153 = scalar_select %p152, %s13, 1
      %s154 = smul.addr %s153, 8
      %s155 = scalar_lea.vmem %s2, %s154
      %v156 = vld [vmem:[%s147] sm:$0xff]
      %v157 = vld [vmem:[%s151] sm:$0xff]
      %158 = vmax.xlane.f32.xlu0 %v156
      %v159 = vpop.xlane.xlu0 %158
      %v160 = vsub.f32 %v156, %v159
      %v161 = vmul.f32 %v160, 1.442695
      %v162 = vpow.pop %v161
      %163 = vadd.xlane.f32.xlu0 %v162
      %v164 = vpop.xlane.xlu0 %163
      %v165 = vlog2.pop %v164
      %v166 = vmul.f32 %v165, 0.6931472
      %167 = vadd.xlane.f32.xlu0 %v160
      %v168 = vpop.xlane.xlu0 %167
      %v169 = vlaneseq
      %v170 = vand.u32 %v169, 127
      %171 = vset.pattern.permute.xlu0 0
      %172 = vperm.xlu0 %171, %v157
      %v173 = vpop.permute.xlu0 %172
      %vm174 = vcmp.eq.s32.totalorder %v170, %v173
      %v175 = vsel %vm174, %v160, 0.0
      %176 = vadd.xlane.f32.xlu0 %v175
      %v177 = vpop.xlane.xlu0 %176
      %v178 = vmul.f32 %v168, 0.0007874016
      %v179 = vmul.f32 %v177, 0.8992126
      %v180 = vadd.f32 %v178, %v179
      %v181 = vsub.f32 %v166, %v180
      %s182 = smul.u32 %s13, 8
      %v183 = vlaneseq
      %v184 = vshrl.u32 %v183, 7
      %v185 = vstv %s182
      %v186 = vadd.s32 %v185, %v184
      %vm187 = vcmp.lt.s32.totalorder %v186, 16
      %v188 = vsel %vm187, %v181, 0.0
      %vm189 = vcmask 7168
      %190 = vst.msk [vmem:[%s155] sm:$0xff] %vm189, %v188
      %p191 = scmp.lt.s32.totalorder %s13, 1
      %s192 = scalar_select %p191, %s13, 1
      %s193 = smul.addr %s192, 8
      %s194 = scalar_lea.vmem %s2, %s193
      // Predicated region
      $region29: #{tpu_custom_call.1} parent=27 // pred_check
        %p195 = pneg %p83
      $region30: #{tpu_custom_call.1} parent=27 // pred_check_branch
        %197 = sbr.rel (%p195) target = $region32
      $region31: #{tpu_custom_call.1} parent=27 // pred_region
        _
      $region32: #{tpu_custom_call.1} parent=27 // pred_fallthru
        _
    $region28: #{tpu_custom_call.1} parent=5 // pred_fallthru
      _
    %p198 = scmp.le.s32.totalorder 2, %s8
    // Predicated region
    $region33: #{tpu_custom_call.1} parent=5 // pred_check
      %p199 = pneg %p198
    $region34: #{tpu_custom_call.1} parent=5 // pred_check_branch
      %201 = sbr.rel (%p199) target = $region36
    $region35: #{tpu_custom_call.1} parent=5 // pred_region
      %s202 = ssub.s32 %s8, 2
      // Predicated region
      $region37: #{tpu_custom_call.1} parent=35 // pred_check
        %p203 = pneg %p89
      $region38: #{tpu_custom_call.1} parent=35 // pred_check_branch
        %205 = sbr.rel (%p203) target = $region40
      $region39: #{tpu_custom_call.1} parent=35 // pred_region
        %p206 = scmp.lt.s32.totalorder %s14, 1
        %s207 = scalar_select %p206, %s14, 1
        %s208 = smul.addr %s207, 8
        %s209 = scalar_lea.vmem %s2, %s208
      $region40: #{tpu_custom_call.1} parent=35 // pred_fallthru
        _
    $region36: #{tpu_custom_call.1} parent=5 // pred_fallthru
      _
  $region6: #{tpu_custom_call.1} parent=0 // loop_footer
    %s12 = sadd.s32 1, %s8
  $region7: #{tpu_custom_call.1} parent=0 // loop_footer_branch
    %7 = sbr.rel target = $region3
  $region8: #{tpu_custom_call.1} parent=0 // loop_exit
    _

</llo_original>
